<compile_context>
chip_gen: v7x
topology: tpu7x:2x2x1
jax: 0.10.0
libtpu: 0.0.40
codegen_flags: <defaults>
</compile_context>

<pallas_src>
import functools

import jax
import jax.numpy as jnp
from jax.experimental import pallas as pl
from jax.experimental.pallas import tpu as pltpu

BN_EPS = 1e-5


def _bn_train(x, gamma, beta):
    """nn.BatchNorm1d training-mode forward as a fused scale/shift.

    Single-pass stats: mu = E[x], var = E[x^2] - mu^2 (biased); the two
    sublane reductions are independent so they can run on separate XLUs.
    """
    mu = jnp.mean(x, axis=0, keepdims=True)
    ex2 = jnp.mean(x * x, axis=0, keepdims=True)
    var = jnp.maximum(ex2 - mu * mu, 0.0)      # guard f32 cancellation
    s = gamma * jax.lax.rsqrt(var + BN_EPS)    # rsqrt rides the EUP slot
    return x * s + (beta - mu * s)


def kl_pmvae_kernel(x1_ref, x2_ref, eps_ref, w1_ref, w2_ref, wd2_ref, wd1_ref,
                    bn_ref, out_ref, *, input_n1, input_n2, level_2_dim,
                    level_2_pad, z_dim, out_width):
    n1, n2, l2, l2p, zd = input_n1, input_n2, level_2_dim, level_2_pad, z_dim

    x1 = x1_ref[...]                          # (B, n1)
    x2 = x2_ref[...]                          # (B, n2)
    eps = eps_ref[...]                        # (B, zd)

    bnp = bn_ref[...]                         # (8, max_dim) packed gammas/betas
    g1, be1 = bnp[0:1, :l2], bnp[1:2, :l2]
    g2, be2 = bnp[2:3, :2 * zd], bnp[3:4, :2 * zd]
    gd2, bed2 = bnp[4:5, :l2], bnp[5:6, :l2]
    gd1, bed1 = bnp[6:7, :n1], bnp[7:8, :n1]

    # ---- encode ----
    # level2_layer = relu(bn1(e_fc1(x1)))   (linear bias folded away by BN)
    h1 = jnp.dot(x1, w1_ref[...], preferred_element_type=jnp.float32)
    h1 = jnp.maximum(_bn_train(h1, g1, be1), 0.0)

    # conc = [h1 | x2]; fused heads: pre = conc @ [W_mean | W_logvar].
    # w2 rows: [h-part (padded to l2p) ; x2-part]; both slices are tile-aligned.
    w2 = w2_ref[...]                          # (l2p + n2, 2*zd)
    pre = jnp.dot(h1, w2[:l2, :], preferred_element_type=jnp.float32)
    pre = pre + jnp.dot(x2, w2[l2p:l2p + n2, :],
                        preferred_element_type=jnp.float32)
    ml = _bn_train(pre, g2, be2)              # [latent_mean | latent_logvar]
    mean = ml[:, :zd]
    logvar = ml[:, zd:2 * zd]

    # ---- reparameterize ----
    z = eps * jnp.exp(0.5 * logvar) + mean

    # ---- decode ----
    d2 = jnp.dot(z, wd2_ref[...], preferred_element_type=jnp.float32)
    d2 = jnp.maximum(_bn_train(d2, gd2, bed2), 0.0)
    d1 = jnp.dot(d2, wd1_ref[...], preferred_element_type=jnp.float32)
    recon = jax.nn.sigmoid(_bn_train(d1, gd1, bed1))

    # ---- single lane-dense output store: [ml | z | recon | 0-pad] ----
    total = 3 * zd + n1
    pieces = [ml, z, recon]
    if out_width > total:
        pieces.append(jnp.zeros((ml.shape[0], out_width - total), jnp.float32))
    out_ref[...] = jnp.concatenate(pieces, axis=1)


def kl_pmvae_forward(x1, x2, eps, kparams, *, level_2_dim, z_dim):
    """kparams = (w1, w2, wd2, wd1, bnpack); weights pre-transposed to (in, out)."""
    B, n1 = x1.shape
    n2 = x2.shape[1]
    zd = z_dim
    assert B >= 2, "training-mode BatchNorm degenerates (var=0) at B=1"
    w1, w2, wd2, wd1, bnpack = kparams
    l2_pad = w2.shape[0] - n2                # level_2_dim padded to multiple of 8

    total = 3 * zd + n1                      # [mean|logvar] + z + recon_x1
    out_w = max(128, pl.cdiv(total, 128) * 128)   # lane-dense output slab

    kern = functools.partial(
        kl_pmvae_kernel, input_n1=n1, input_n2=n2, level_2_dim=level_2_dim,
        level_2_pad=l2_pad, z_dim=zd, out_width=out_w)

    vmem = pl.BlockSpec(memory_space=pltpu.MemorySpace.VMEM)
    inputs = (x1.astype(jnp.float32), x2.astype(jnp.float32),
              eps.astype(jnp.float32), w1, w2, wd2, wd1, bnpack)

    out = pl.pallas_call(
        kern,
        out_shape=jax.ShapeDtypeStruct((B, out_w), jnp.float32),
        in_specs=[vmem] * len(inputs),
        out_specs=vmem,
    )(*inputs)

    mean = out[:, :zd]
    logvar = out[:, zd:2 * zd]
    z = out[:, 2 * zd:3 * zd]
    recon = out[:, 3 * zd:3 * zd + n1]
    return mean, logvar, z, recon


# ----------------------------------------------------------------------------
# Parameter construction + pure-JAX reference (full PyTorch fidelity: biases
# kept, mean/logvar heads un-fused, two-pass variance) used as a self-check.
# ----------------------------------------------------------------------------
def init_reference_params(key, input_n1, input_n2, level_2_dim, z_dim):
    n1, n2, l2, zd = input_n1, input_n2, level_2_dim, z_dim
    ks = jax.random.split(key, 10)
    scale = 0.1

    def lin(k, n_in, n_out):
        kw, kb = jax.random.split(k)
        w = scale * jax.random.normal(kw, (n_in, n_out), jnp.float32)  # (in, out)
        b = scale * jax.random.normal(kb, (n_out,), jnp.float32)
        return w, b

    def bn(k, dim):
        kg, kb = jax.random.split(k)
        g = 1.0 + 0.1 * jax.random.normal(kg, (dim,), jnp.float32)
        b = 0.1 * jax.random.normal(kb, (dim,), jnp.float32)
        return g, b

    w1, b1 = lin(ks[0], n1, l2)
    g1, be1 = bn(ks[1], l2)
    wm, bm = lin(ks[2], l2 + n2, zd)
    wv, bv = lin(ks[3], l2 + n2, zd)
    gm, bem = bn(ks[4], zd)
    gv, bev = bn(ks[5], zd)
    wd2, bd2 = lin(ks[6], zd, l2)
    gd2, bed2 = bn(ks[7], l2)
    wd1, bd1 = lin(ks[8], l2, n1)
    gd1, bed1 = bn(ks[9], n1)

    return dict(w1=w1, b1=b1, g1=g1, be1=be1,
                wm=wm, bm=bm, wv=wv, bv=bv, gm=gm, bem=bem, gv=gv, bev=bev,
                wd2=wd2, bd2=bd2, gd2=gd2, bed2=bed2,
                wd1=wd1, bd1=bd1, gd1=gd1, bed1=bed1)


def pack_kernel_params(p, input_n1, input_n2, level_2_dim, z_dim):
    n1, n2, l2, zd = input_n1, input_n2, level_2_dim, z_dim
    l2_pad = ((l2 + 7) // 8) * 8             # keep the w2 sublane split aligned

    def pad_rows(w):                          # (l2+n2, zd) -> (l2_pad+n2, zd)
        if l2_pad == l2:
            return w
        zpad = jnp.zeros((l2_pad - l2, w.shape[1]), w.dtype)
        return jnp.concatenate([w[:l2], zpad, w[l2:]], axis=0)

    w2 = jnp.concatenate([pad_rows(p["wm"]), pad_rows(p["wv"])], axis=1)

    maxw = max(n1, l2, 2 * zd)

    def row(v):
        return jnp.pad(v, (0, maxw - v.shape[0]))

    bnpack = jnp.stack([
        row(p["g1"]), row(p["be1"]),
        row(jnp.concatenate([p["gm"], p["gv"]])),
        row(jnp.concatenate([p["bem"], p["bev"]])),
        row(p["gd2"]), row(p["bed2"]),
        row(p["gd1"]), row(p["bed1"]),
    ])                                        # (8, maxw)
    return (p["w1"], w2, p["wd2"], p["wd1"], bnpack)


def reference_forward(x1, x2, eps, p):
    hp = jax.lax.Precision.HIGHEST

    def bn(x, g, b):
        mu = jnp.mean(x, axis=0, keepdims=True)
        var = jnp.mean((x - mu) ** 2, axis=0, keepdims=True)
        return (x - mu) / jnp.sqrt(var + BN_EPS) * g + b

    h1 = jax.nn.relu(bn(jnp.dot(x1, p["w1"], precision=hp) + p["b1"],
                        p["g1"], p["be1"]))
    conc = jnp.concatenate([h1, x2], axis=1)
    mean = bn(jnp.dot(conc, p["wm"], precision=hp) + p["bm"], p["gm"], p["bem"])
    logvar = bn(jnp.dot(conc, p["wv"], precision=hp) + p["bv"], p["gv"], p["bev"])
    z = eps * jnp.exp(0.5 * logvar) + mean
    d2 = jax.nn.relu(bn(jnp.dot(z, p["wd2"], precision=hp) + p["bd2"],
                        p["gd2"], p["bed2"]))
    recon = jax.nn.sigmoid(bn(jnp.dot(d2, p["wd1"], precision=hp) + p["bd1"],
                              p["gd1"], p["bed1"]))
    return mean, logvar, z, recon


if __name__ == "__main__":
    B = 4
    input_n1 = 32
    input_n2 = 8
    level_2_dim = input_n1 // 2   # module default
    z_dim = 8

    key = jax.random.PRNGKey(0)
    k_x1, k_x2, k_eps, k_par = jax.random.split(key, 4)

    x1 = jax.random.uniform(k_x1, (B, input_n1), jnp.float32)
    x2 = jax.random.uniform(k_x2, (B, input_n2), jnp.float32)
    # torch.randn_like(std) in _reparameterize -> supplied as an explicit input
    eps = jax.random.normal(k_eps, (B, z_dim), jnp.float32)

    ref_p = init_reference_params(k_par, input_n1, input_n2, level_2_dim, z_dim)
    kparams = pack_kernel_params(ref_p, input_n1, input_n2, level_2_dim, z_dim)

    mean, logvar, z, recon_x1 = kl_pmvae_forward(
        x1, x2, eps, kparams, level_2_dim=level_2_dim, z_dim=z_dim)
    jax.block_until_ready((mean, logvar, z, recon_x1))

    assert mean.shape == (B, z_dim)
    assert logvar.shape == (B, z_dim)
    assert z.shape == (B, z_dim)
    assert recon_x1.shape == (B, input_n1)

    # Self-check against a pure-JAX reference with full PyTorch fidelity
    # (biases kept, heads un-fused, two-pass variance).
    ref = reference_forward(x1, x2, eps, ref_p)
    for got, want in zip((mean, logvar, z, recon_x1), ref):
        assert jnp.allclose(got, want, atol=2e-3, rtol=2e-3), \
            float(jnp.max(jnp.abs(got - want)))

    print("KERNEL_OK")
</pallas_src>

<mosaic_0001>
module attributes {stable_mosaic.version = 11 : i64} {
  func.func @kl_pmvae_kernel(%arg0: memref<4x32xf32, #tpu.memory_space<vmem>>, %arg1: memref<4x8xf32, #tpu.memory_space<vmem>>, %arg2: memref<4x8xf32, #tpu.memory_space<vmem>>, %arg3: memref<32x16xf32, #tpu.memory_space<vmem>>, %arg4: memref<24x16xf32, #tpu.memory_space<vmem>>, %arg5: memref<8x16xf32, #tpu.memory_space<vmem>>, %arg6: memref<16x32xf32, #tpu.memory_space<vmem>>, %arg7: memref<8x32xf32, #tpu.memory_space<vmem>>, %arg8: memref<4x128xf32, #tpu.memory_space<vmem>>) attributes {dimension_semantics = [], scalar_prefetch = 0 : i64, scratch_operands = 0 : i64, tpu.core_type = #tpu.core_type<tc>} {
    %c0 = arith.constant 0 : index
    %c0_0 = arith.constant 0 : index
    %0 = vector.load %arg0[%c0, %c0_0] : memref<4x32xf32, #tpu.memory_space<vmem>>, vector<4x32xf32>
    %c0_1 = arith.constant 0 : index
    %c0_2 = arith.constant 0 : index
    %1 = vector.load %arg1[%c0_1, %c0_2] : memref<4x8xf32, #tpu.memory_space<vmem>>, vector<4x8xf32>
    %c0_3 = arith.constant 0 : index
    %c0_4 = arith.constant 0 : index
    %2 = vector.load %arg2[%c0_3, %c0_4] : memref<4x8xf32, #tpu.memory_space<vmem>>, vector<4x8xf32>
    %c0_5 = arith.constant 0 : index
    %c0_6 = arith.constant 0 : index
    %3 = vector.load %arg7[%c0_5, %c0_6] : memref<8x32xf32, #tpu.memory_space<vmem>>, vector<8x32xf32>
    %4 = vector.extract_strided_slice %3 {offsets = [0, 0], sizes = [1, 16], strides = [1, 1]} : vector<8x32xf32> to vector<1x16xf32>
    %5 = vector.extract_strided_slice %3 {offsets = [1, 0], sizes = [1, 16], strides = [1, 1]} : vector<8x32xf32> to vector<1x16xf32>
    %6 = vector.extract_strided_slice %3 {offsets = [2, 0], sizes = [1, 16], strides = [1, 1]} : vector<8x32xf32> to vector<1x16xf32>
    %7 = vector.extract_strided_slice %3 {offsets = [3, 0], sizes = [1, 16], strides = [1, 1]} : vector<8x32xf32> to vector<1x16xf32>
    %8 = vector.extract_strided_slice %3 {offsets = [4, 0], sizes = [1, 16], strides = [1, 1]} : vector<8x32xf32> to vector<1x16xf32>
    %9 = vector.extract_strided_slice %3 {offsets = [5, 0], sizes = [1, 16], strides = [1, 1]} : vector<8x32xf32> to vector<1x16xf32>
    %10 = vector.extract_strided_slice %3 {offsets = [6, 0], sizes = [1, 32], strides = [1, 1]} : vector<8x32xf32> to vector<1x32xf32>
    %11 = vector.extract_strided_slice %3 {offsets = [7, 0], sizes = [1, 32], strides = [1, 1]} : vector<8x32xf32> to vector<1x32xf32>
    %c0_7 = arith.constant 0 : index
    %c0_8 = arith.constant 0 : index
    %12 = vector.load %arg3[%c0_7, %c0_8] : memref<32x16xf32, #tpu.memory_space<vmem>>, vector<32x16xf32>
    %cst = arith.constant dense<0.000000e+00> : vector<4x16xf32>
    %13 = tpu.matmul %0, %12, %cst {dimension_numbers = #tpu.dot_dimension_numbers<[1], [0], [0], [1], [0, 0, 1, 1], [], []>} : vector<4x32xf32>, vector<32x16xf32>, vector<4x16xf32> -> vector<4x16xf32>
    %cst_9 = arith.constant dense<0.000000e+00> : vector<16xf32>
    %14 = vector.multi_reduction <add>, %13, %cst_9 [0] : vector<4x16xf32> to vector<16xf32>
    %15 = vector.shape_cast %14 : vector<16xf32> to vector<1x16xf32>
    %cst_10 = arith.constant 4.000000e+00 : f32
    %16 = vector.broadcast %cst_10 : f32 to vector<1x16xf32>
    %17 = arith.divf %15, %16 : vector<1x16xf32>
    %18 = arith.mulf %13, %13 : vector<4x16xf32>
    %cst_11 = arith.constant dense<0.000000e+00> : vector<16xf32>
    %19 = vector.multi_reduction <add>, %18, %cst_11 [0] : vector<4x16xf32> to vector<16xf32>
    %20 = vector.shape_cast %19 : vector<16xf32> to vector<1x16xf32>
    %cst_12 = arith.constant 4.000000e+00 : f32
    %21 = vector.broadcast %cst_12 : f32 to vector<1x16xf32>
    %22 = arith.divf %20, %21 : vector<1x16xf32>
    %23 = arith.mulf %17, %17 : vector<1x16xf32>
    %24 = arith.subf %22, %23 : vector<1x16xf32>
    %cst_13 = arith.constant 0.000000e+00 : f32
    %25 = vector.broadcast %cst_13 : f32 to vector<1x16xf32>
    %26 = arith.maximumf %24, %25 : vector<1x16xf32>
    %cst_14 = arith.constant 9.99999974E-6 : f32
    %27 = vector.broadcast %cst_14 : f32 to vector<1x16xf32>
    %28 = arith.addf %26, %27 : vector<1x16xf32>
    %29 = math.rsqrt %28 : vector<1x16xf32>
    %30 = arith.mulf %4, %29 : vector<1x16xf32>
    %31 = vector.broadcast %30 : vector<1x16xf32> to vector<4x16xf32>
    %32 = arith.mulf %13, %31 : vector<4x16xf32>
    %33 = arith.mulf %17, %30 : vector<1x16xf32>
    %34 = arith.subf %5, %33 : vector<1x16xf32>
    %35 = vector.broadcast %34 : vector<1x16xf32> to vector<4x16xf32>
    %36 = arith.addf %32, %35 : vector<4x16xf32>
    %cst_15 = arith.constant 0.000000e+00 : f32
    %37 = vector.broadcast %cst_15 : f32 to vector<4x16xf32>
    %38 = arith.maximumf %36, %37 : vector<4x16xf32>
    %c0_16 = arith.constant 0 : index
    %c0_17 = arith.constant 0 : index
    %39 = vector.load %arg4[%c0_16, %c0_17] : memref<24x16xf32, #tpu.memory_space<vmem>>, vector<24x16xf32>
    %40 = vector.extract_strided_slice %39 {offsets = [0, 0], sizes = [16, 16], strides = [1, 1]} : vector<24x16xf32> to vector<16x16xf32>
    %cst_18 = arith.constant dense<0.000000e+00> : vector<4x16xf32>
    %41 = tpu.matmul %38, %40, %cst_18 {dimension_numbers = #tpu.dot_dimension_numbers<[1], [0], [0], [1], [0, 0, 1, 1], [], []>} : vector<4x16xf32>, vector<16x16xf32>, vector<4x16xf32> -> vector<4x16xf32>
    %42 = vector.extract_strided_slice %39 {offsets = [16, 0], sizes = [8, 16], strides = [1, 1]} : vector<24x16xf32> to vector<8x16xf32>
    %cst_19 = arith.constant dense<0.000000e+00> : vector<4x16xf32>
    %43 = tpu.matmul %1, %42, %cst_19 {dimension_numbers = #tpu.dot_dimension_numbers<[1], [0], [0], [1], [0, 0, 1, 1], [], []>} : vector<4x8xf32>, vector<8x16xf32>, vector<4x16xf32> -> vector<4x16xf32>
    %44 = arith.addf %41, %43 : vector<4x16xf32>
    %cst_20 = arith.constant dense<0.000000e+00> : vector<16xf32>
    %45 = vector.multi_reduction <add>, %44, %cst_20 [0] : vector<4x16xf32> to vector<16xf32>
    %46 = vector.shape_cast %45 : vector<16xf32> to vector<1x16xf32>
    %cst_21 = arith.constant 4.000000e+00 : f32
    %47 = vector.broadcast %cst_21 : f32 to vector<1x16xf32>
    %48 = arith.divf %46, %47 : vector<1x16xf32>
    %49 = arith.mulf %44, %44 : vector<4x16xf32>
    %cst_22 = arith.constant dense<0.000000e+00> : vector<16xf32>
    %50 = vector.multi_reduction <add>, %49, %cst_22 [0] : vector<4x16xf32> to vector<16xf32>
    %51 = vector.shape_cast %50 : vector<16xf32> to vector<1x16xf32>
    %cst_23 = arith.constant 4.000000e+00 : f32
    %52 = vector.broadcast %cst_23 : f32 to vector<1x16xf32>
    %53 = arith.divf %51, %52 : vector<1x16xf32>
    %54 = arith.mulf %48, %48 : vector<1x16xf32>
    %55 = arith.subf %53, %54 : vector<1x16xf32>
    %cst_24 = arith.constant 0.000000e+00 : f32
    %56 = vector.broadcast %cst_24 : f32 to vector<1x16xf32>
    %57 = arith.maximumf %55, %56 : vector<1x16xf32>
    %cst_25 = arith.constant 9.99999974E-6 : f32
    %58 = vector.broadcast %cst_25 : f32 to vector<1x16xf32>
    %59 = arith.addf %57, %58 : vector<1x16xf32>
    %60 = math.rsqrt %59 : vector<1x16xf32>
    %61 = arith.mulf %6, %60 : vector<1x16xf32>
    %62 = vector.broadcast %61 : vector<1x16xf32> to vector<4x16xf32>
    %63 = arith.mulf %44, %62 : vector<4x16xf32>
    %64 = arith.mulf %48, %61 : vector<1x16xf32>
    %65 = arith.subf %7, %64 : vector<1x16xf32>
    %66 = vector.broadcast %65 : vector<1x16xf32> to vector<4x16xf32>
    %67 = arith.addf %63, %66 : vector<4x16xf32>
    %68 = vector.extract_strided_slice %67 {offsets = [0, 0], sizes = [4, 8], strides = [1, 1]} : vector<4x16xf32> to vector<4x8xf32>
    %69 = vector.extract_strided_slice %67 {offsets = [0, 8], sizes = [4, 8], strides = [1, 1]} : vector<4x16xf32> to vector<4x8xf32>
    %cst_26 = arith.constant 5.000000e-01 : f32
    %70 = vector.broadcast %cst_26 : f32 to vector<4x8xf32>
    %71 = arith.mulf %70, %69 : vector<4x8xf32>
    %72 = math.exp %71 : vector<4x8xf32>
    %73 = arith.mulf %2, %72 : vector<4x8xf32>
    %74 = arith.addf %73, %68 : vector<4x8xf32>
    %c0_27 = arith.constant 0 : index
    %c0_28 = arith.constant 0 : index
    %75 = vector.load %arg5[%c0_27, %c0_28] : memref<8x16xf32, #tpu.memory_space<vmem>>, vector<8x16xf32>
    %cst_29 = arith.constant dense<0.000000e+00> : vector<4x16xf32>
    %76 = tpu.matmul %74, %75, %cst_29 {dimension_numbers = #tpu.dot_dimension_numbers<[1], [0], [0], [1], [0, 0, 1, 1], [], []>} : vector<4x8xf32>, vector<8x16xf32>, vector<4x16xf32> -> vector<4x16xf32>
    %cst_30 = arith.constant dense<0.000000e+00> : vector<16xf32>
    %77 = vector.multi_reduction <add>, %76, %cst_30 [0] : vector<4x16xf32> to vector<16xf32>
    %78 = vector.shape_cast %77 : vector<16xf32> to vector<1x16xf32>
    %cst_31 = arith.constant 4.000000e+00 : f32
    %79 = vector.broadcast %cst_31 : f32 to vector<1x16xf32>
    %80 = arith.divf %78, %79 : vector<1x16xf32>
    %81 = arith.mulf %76, %76 : vector<4x16xf32>
    %cst_32 = arith.constant dense<0.000000e+00> : vector<16xf32>
    %82 = vector.multi_reduction <add>, %81, %cst_32 [0] : vector<4x16xf32> to vector<16xf32>
    %83 = vector.shape_cast %82 : vector<16xf32> to vector<1x16xf32>
    %cst_33 = arith.constant 4.000000e+00 : f32
    %84 = vector.broadcast %cst_33 : f32 to vector<1x16xf32>
    %85 = arith.divf %83, %84 : vector<1x16xf32>
    %86 = arith.mulf %80, %80 : vector<1x16xf32>
    %87 = arith.subf %85, %86 : vector<1x16xf32>
    %cst_34 = arith.constant 0.000000e+00 : f32
    %88 = vector.broadcast %cst_34 : f32 to vector<1x16xf32>
    %89 = arith.maximumf %87, %88 : vector<1x16xf32>
    %cst_35 = arith.constant 9.99999974E-6 : f32
    %90 = vector.broadcast %cst_35 : f32 to vector<1x16xf32>
    %91 = arith.addf %89, %90 : vector<1x16xf32>
    %92 = math.rsqrt %91 : vector<1x16xf32>
    %93 = arith.mulf %8, %92 : vector<1x16xf32>
    %94 = vector.broadcast %93 : vector<1x16xf32> to vector<4x16xf32>
    %95 = arith.mulf %76, %94 : vector<4x16xf32>
    %96 = arith.mulf %80, %93 : vector<1x16xf32>
    %97 = arith.subf %9, %96 : vector<1x16xf32>
    %98 = vector.broadcast %97 : vector<1x16xf32> to vector<4x16xf32>
    %99 = arith.addf %95, %98 : vector<4x16xf32>
    %cst_36 = arith.constant 0.000000e+00 : f32
    %100 = vector.broadcast %cst_36 : f32 to vector<4x16xf32>
    %101 = arith.maximumf %99, %100 : vector<4x16xf32>
    %c0_37 = arith.constant 0 : index
    %c0_38 = arith.constant 0 : index
    %102 = vector.load %arg6[%c0_37, %c0_38] : memref<16x32xf32, #tpu.memory_space<vmem>>, vector<16x32xf32>
    %cst_39 = arith.constant dense<0.000000e+00> : vector<4x32xf32>
    %103 = tpu.matmul %101, %102, %cst_39 {dimension_numbers = #tpu.dot_dimension_numbers<[1], [0], [0], [1], [0, 0, 1, 1], [], []>} : vector<4x16xf32>, vector<16x32xf32>, vector<4x32xf32> -> vector<4x32xf32>
    %cst_40 = arith.constant dense<0.000000e+00> : vector<32xf32>
    %104 = vector.multi_reduction <add>, %103, %cst_40 [0] : vector<4x32xf32> to vector<32xf32>
    %105 = vector.shape_cast %104 : vector<32xf32> to vector<1x32xf32>
    %cst_41 = arith.constant 4.000000e+00 : f32
    %106 = vector.broadcast %cst_41 : f32 to vector<1x32xf32>
    %107 = arith.divf %105, %106 : vector<1x32xf32>
    %108 = arith.mulf %103, %103 : vector<4x32xf32>
    %cst_42 = arith.constant dense<0.000000e+00> : vector<32xf32>
    %109 = vector.multi_reduction <add>, %108, %cst_42 [0] : vector<4x32xf32> to vector<32xf32>
    %110 = vector.shape_cast %109 : vector<32xf32> to vector<1x32xf32>
    %cst_43 = arith.constant 4.000000e+00 : f32
    %111 = vector.broadcast %cst_43 : f32 to vector<1x32xf32>
    %112 = arith.divf %110, %111 : vector<1x32xf32>
    %113 = arith.mulf %107, %107 : vector<1x32xf32>
    %114 = arith.subf %112, %113 : vector<1x32xf32>
    %cst_44 = arith.constant 0.000000e+00 : f32
    %115 = vector.broadcast %cst_44 : f32 to vector<1x32xf32>
    %116 = arith.maximumf %114, %115 : vector<1x32xf32>
    %cst_45 = arith.constant 9.99999974E-6 : f32
    %117 = vector.broadcast %cst_45 : f32 to vector<1x32xf32>
    %118 = arith.addf %116, %117 : vector<1x32xf32>
    %119 = math.rsqrt %118 : vector<1x32xf32>
    %120 = arith.mulf %10, %119 : vector<1x32xf32>
    %121 = vector.broadcast %120 : vector<1x32xf32> to vector<4x32xf32>
    %122 = arith.mulf %103, %121 : vector<4x32xf32>
    %123 = arith.mulf %107, %120 : vector<1x32xf32>
    %124 = arith.subf %11, %123 : vector<1x32xf32>
    %125 = vector.broadcast %124 : vector<1x32xf32> to vector<4x32xf32>
    %126 = arith.addf %122, %125 : vector<4x32xf32>
    %127 = arith.negf %126 : vector<4x32xf32>
    %128 = math.exp %127 : vector<4x32xf32>
    %cst_46 = arith.constant 1.000000e+00 : f32
    %129 = vector.broadcast %cst_46 : f32 to vector<4x32xf32>
    %130 = arith.addf %129, %128 : vector<4x32xf32>
    %131 = arith.divf %129, %130 : vector<4x32xf32>
    %cst_47 = arith.constant 0.000000e+00 : f32
    %132 = vector.broadcast %cst_47 : f32 to vector<4x72xf32>
    %133 = tpu.concatenate %67, %74, %131, %132 in 1 : vector<4x16xf32>, vector<4x8xf32>, vector<4x32xf32>, vector<4x72xf32> -> vector<4x128xf32>
    %c0_48 = arith.constant 0 : index
    %c0_49 = arith.constant 0 : index
    %134 = vector.load %arg8[%c0_48, %c0_49] : memref<4x128xf32, #tpu.memory_space<vmem>>, vector<4x128xf32>
    tpu.vector_store %arg8[%c0_48, %c0_49], %133 {strides = array<i32>} : memref<4x128xf32, #tpu.memory_space<vmem>>, vector<4x128xf32>,
    return
  }
}

</mosaic_0001>

<llo_original>
// kernel: tpu_custom_call.1
$region0: #{tpu_custom_call.1}
  #allocation0 [shape = 'u32[]', space=smem, size = 0x4, offset = 0x4, fixed_abs, tag = 'smem constant byte address 0x4 - core index']
  #allocation1 [shape = 'u32[144,128]{1,0:T(1,128)}', space=vmem, size = 0x12000, scoped, tag = 'internal scratch']
  %s0 = inlined_call_operand.vmem [shape: f32[4,32], index: 0, kind: input, shape index: {}]
  %s1 = inlined_call_operand.vmem [shape: f32[4,8], index: 1, kind: input, shape index: {}]
  %s2 = inlined_call_operand.vmem [shape: f32[4,8], index: 2, kind: input, shape index: {}]
  %s3 = inlined_call_operand.vmem [shape: f32[32,16], index: 3, kind: input, shape index: {}]
  %s4 = inlined_call_operand.vmem [shape: f32[24,16], index: 4, kind: input, shape index: {}]
  %s5 = inlined_call_operand.vmem [shape: f32[8,16], index: 5, kind: input, shape index: {}]
  %s6 = inlined_call_operand.vmem [shape: f32[16,32], index: 6, kind: input, shape index: {}]
  %s7 = inlined_call_operand.vmem [shape: f32[8,32], index: 7, kind: input, shape index: {}]
  %s8 = inlined_call_operand.hbm [shape: f32[4,128], index: 8, kind: output, shape index: {}]
  %s9 = sld [smem:[#allocation0]]
  $region42: #{tpu_custom_call.1} parent=0
    _
  %s11 = ssub.s32 1, %s9
  %s12 = scalar_select 0, %s11, %s9
  $region1: #{tpu_custom_call.1} parent=0
    #allocation2 [shape = 'u8[2048]{0}', space=vmem, size = 0x800, scoped, tag = 'output window, operand 0, single buffered']
    #allocation3 [shape = 's32[1]{0}', space=sflag, size = 0x4, scoped, tag = 'scoped memory for tpu_custom_call.1']
    %13 = vsyncpa [#allocation3], 0
    // Predicated region
    $region2: #{tpu_custom_call.1} parent=1 // pred_check
      _
    $region3: #{tpu_custom_call.1} parent=1 // pred_check_branch
      %15 = sbr.rel (0) target = $region5
    $region4: #{tpu_custom_call.1} parent=1 // pred_region
      _
    $region5: #{tpu_custom_call.1} parent=1 // pred_fallthru
      _
    // Predicated region
    $region6: #{tpu_custom_call.1} parent=1 // pred_check
      _
    $region7: #{tpu_custom_call.1} parent=1 // pred_check_branch
      %17 = sbr.rel (0) target = $region9
    $region8: #{tpu_custom_call.1} parent=1 // pred_region
      _
    $region9: #{tpu_custom_call.1} parent=1 // pred_fallthru
      _
    // Predicated region
    $region10: #{tpu_custom_call.1} parent=1 // pred_check
      _
    $region11: #{tpu_custom_call.1} parent=1 // pred_check_branch
      %19 = sbr.rel (0) target = $region13
    $region12: #{tpu_custom_call.1} parent=1 // pred_region
      _
    $region13: #{tpu_custom_call.1} parent=1 // pred_fallthru
      _
    // Predicated region
    $region14: #{tpu_custom_call.1} parent=1 // pred_check
      _
    $region15: #{tpu_custom_call.1} parent=1 // pred_check_branch
      %21 = sbr.rel (0) target = $region17
    $region16: #{tpu_custom_call.1} parent=1 // pred_region
      _
    $region17: #{tpu_custom_call.1} parent=1 // pred_fallthru
      _
    // Predicated region
    $region18: #{tpu_custom_call.1} parent=1 // pred_check
      _
    $region19: #{tpu_custom_call.1} parent=1 // pred_check_branch
      %23 = sbr.rel (0) target = $region21
    $region20: #{tpu_custom_call.1} parent=1 // pred_region
      _
    $region21: #{tpu_custom_call.1} parent=1 // pred_fallthru
      _
    // Predicated region
    $region22: #{tpu_custom_call.1} parent=1 // pred_check
      _
    $region23: #{tpu_custom_call.1} parent=1 // pred_check_branch
      %25 = sbr.rel (0) target = $region25
    $region24: #{tpu_custom_call.1} parent=1 // pred_region
      _
    $region25: #{tpu_custom_call.1} parent=1 // pred_fallthru
      _
    // Predicated region
    $region26: #{tpu_custom_call.1} parent=1 // pred_check
      _
    $region27: #{tpu_custom_call.1} parent=1 // pred_check_branch
      %27 = sbr.rel (0) target = $region29
    $region28: #{tpu_custom_call.1} parent=1 // pred_region
      _
    $region29: #{tpu_custom_call.1} parent=1 // pred_fallthru
      _
    // Predicated region
    $region30: #{tpu_custom_call.1} parent=1 // pred_check
      _
    $region31: #{tpu_custom_call.1} parent=1 // pred_check_branch
      %29 = sbr.rel (0) target = $region33
    $region32: #{tpu_custom_call.1} parent=1 // pred_region
      _
    $region33: #{tpu_custom_call.1} parent=1 // pred_fallthru
      _
    %v30 = vld [vmem:[%s0] sm:$0xf]
    %v31 = vld [vmem:[%s1] sm:$0xf]
    %v32 = vld [vmem:[%s2] sm:$0xf]
    %v33 = vld [vmem:[%s7] sm:$0xff]
    %v34 = vld [vmem:[%s3] sm:$0xff]
    %v35 = vld [vmem:[%s3 + $0x8] sm:$0xff]
    %v36 = vld [vmem:[%s3 + $0x10] sm:$0xff]
    %v37 = vld [vmem:[%s3 + $0x18] sm:$0xff]
    %vm38 = vcmask 261120
    %v40 = vsel %vm38, %v30, 0
    %42 = vmatprep.subr.mxu0 0.0
    %43 = vmatpush1.msra.mxu0 %v34
    %44 = vmatprep.subr.mxu0 0.0
    %45 = vmatpush1.msra.mxu0 %v35
    %46 = vmatprep.subr.mxu0 0.0
    %47 = vmatpush1.msra.mxu0 %v36
    %48 = vmatprep.subr.mxu0 0.0
    %49 = vmatpush1.msra.mxu0 %v37
    %50 = vmatprep.subr.mxu0 0.0
    %51 = vmatpush1.msra.mxu0 0.0
    %52 = vmatprep.subr.mxu0 0.0
    %53 = vmatpush1.msra.mxu0 0.0
    %54 = vmatprep.subr.mxu0 0.0
    %55 = vmatpush1.msra.mxu0 0.0
    %56 = vmatprep.subr.mxu0 0.0
    %57 = vmatpush1.msra.mxu0 0.0
    %58 = vmatprep.subr.mxu0 0.0
    %59 = vmatpush1.msra.mxu0 0.0
    %60 = vmatprep.subr.mxu0 0.0
    %61 = vmatpush1.msra.mxu0 0.0
    %62 = vmatprep.subr.mxu0 0.0
    %63 = vmatpush1.msra.mxu0 0.0
    %64 = vmatprep.subr.mxu0 0.0
    %65 = vmatpush1.msra.mxu0 0.0
    %66 = vmatprep.subr.mxu0 0.0
    %67 = vmatpush1.msra.mxu0 0.0
    %68 = vmatprep.subr.mxu0 0.0
    %69 = vmatpush1.msra.mxu0 0.0
    %70 = vmatprep.subr.mxu0 0.0
    %71 = vmatpush1.msra.mxu0 0.0
    %72 = vmatprep.subr.mxu0 0.0
    %73 = vmatpush1.msra.mxu0 0.0
    %74 = vmatprep.subr.mxu0 0.0
    %75 = vmatpush1.msra.mxu0 0.0
    %76 = vmatprep.subr.mxu0 0.0
    %77 = vmatpush1.msra.mxu0 0.0
    %78 = vmatprep.subr.mxu0 0.0
    %79 = vmatpush1.msra.mxu0 0.0
    %80 = vmatprep.subr.mxu0 0.0
    %81 = vmatpush1.msra.mxu0 0.0
    %82 = vmatprep.subr.mxu0 0.0
    %83 = vmatpush1.msra.mxu0 0.0
    %84 = vmatprep.subr.mxu0 0.0
    %85 = vmatpush1.msra.mxu0 0.0
    %86 = vmatprep.subr.mxu0 0.0
    %87 = vmatpush1.msra.mxu0 0.0
    %88 = vmatprep.subr.mxu0 0.0
    %89 = vmatpush1.msra.mxu0 0.0
    %90 = vmatprep.subr.mxu0 0.0
    %91 = vmatpush1.msra.mxu0 0.0
    %92 = vmatprep.subr.mxu0 0.0
    %93 = vmatpush1.msra.mxu0 0.0
    %94 = vmatprep.subr.mxu0 0.0
    %95 = vmatpush1.msra.mxu0 0.0
    %96 = vmatprep.subr.mxu0 0.0
    %97 = vmatpush1.msra.mxu0 0.0
    %98 = vmatprep.subr.mxu0 0.0
    %99 = vmatpush1.msra.mxu0 0.0
    %100 = vmatprep.subr.mxu0 0.0
    %101 = vmatpush1.msra.mxu0 0.0
    %102 = vmatprep.subr.mxu0 0.0
    %103 = vmatpush1.msra.mxu0 0.0
    %104 = vmatprep.subr.mxu0 0.0
    %105 = vmatpush1.msra.mxu0 0.0
    %106 = vmatprep.mubr.f32.mxu0 0.0
    %107 = vmatmul.mubr.f32.gmra.mrb[0].mxu0 %v40
    %v108 = vpop.f32.mrb[0].mxu0
    %v109 = vadd.f32 0.0, %v108
    %v110 = vpop.f32.mrb[0].mxu0
    %111 = vdwg.mxu0
    %vm112 = vcmask 125952
    %v113 = vsel %vm112, %v109, 0.0
    %v114 = vrot.slane %v113, 4
    %v115 = vadd.f32 %v113, %v114
    %v116 = vrot.slane %v115, 2
    %v117 = vadd.f32 %v115, %v116
    %v118 = vrot.slane %v117, 1
    %v119 = vadd.f32 %v117, %v118
    %v120 = vrcp.pop 4.0
    %v121 = vmul.f32 %v119, %v120
    %v122 = vmul.f32 %v109, %v109
    %v123 = vsel %vm112, %v122, 0.0
    %v124 = vrot.slane %v123, 4
    %v125 = vadd.f32 %v123, %v124
    %v126 = vrot.slane %v125, 2
    %v127 = vadd.f32 %v125, %v126
    %v128 = vrot.slane %v127, 1
    %v129 = vadd.f32 %v127, %v128
    %v130 = vmul.f32 %v129, %v120
    %v131 = vmul.f32 %v121, %v121
    %v132 = vsub.f32 %v130, %v131
    %v133 = vmax.f32 %v132, 0.0
    %v134 = vadd.f32 %v133, 1e-05
    %v135 = vrsqrt.pop %v134
    %v136 = vmul.f32 %v33, %v135
    %v137 = vlaneseq
    %v138 = vshrl.u32 %v137, 7
    %v139 = vsub.s32 0, %v138
    %v140 = vrot.slane %v136, %v139
    %v141 = vmul.f32 %v109, %v140
    %v142 = vmul.f32 %v121, %v136
    %v144 = vrot.slane %v142, 7
    %v146 = vsub.f32 %v33, %v144
    %v147 = vlaneseq
    %v148 = vshrl.u32 %v147, 7
    %v149 = vsub.s32 1, %v148
    %v150 = vrot.slane %v146, %v149
    %v151 = vadd.f32 %v141, %v150
    %v152 = vmax.f32 %v151, 0.0
    %v153 = vld [vmem:[%s4] sm:$0xff]
    %v154 = vld [vmem:[%s4 + $0x8] sm:$0xff]
    %v155 = vld [vmem:[%s4 + $0x10] sm:$0xff]
    %vm156 = vcmask 64512
    %v158 = vsel %vm156, %v31, 0
    %160 = vmatprep.subr.mxu0 0.0
    %161 = vmatpush1.msra.mxu0 %v155
    %162 = vmatprep.subr.mxu0 0.0
    %163 = vmatpush1.msra.mxu0 0.0
    %164 = vmatprep.subr.mxu0 0.0
    %165 = vmatpush1.msra.mxu0 0.0
    %166 = vmatprep.subr.mxu0 0.0
    %167 = vmatpush1.msra.mxu0 0.0
    %168 = vmatprep.subr.mxu0 0.0
    %169 = vmatpush1.msra.mxu0 0.0
    %170 = vmatprep.subr.mxu0 0.0
    %171 = vmatpush1.msra.mxu0 0.0
    %172 = vmatprep.subr.mxu0 0.0
    %173 = vmatpush1.msra.mxu0 0.0
    %174 = vmatprep.subr.mxu0 0.0
    %175 = vmatpush1.msra.mxu0 0.0
    %176 = vmatprep.subr.mxu0 0.0
    %177 = vmatpush1.msra.mxu0 0.0
    %178 = vmatprep.subr.mxu0 0.0
    %179 = vmatpush1.msra.mxu0 0.0
    %180 = vmatprep.subr.mxu0 0.0
    %181 = vmatpush1.msra.mxu0 0.0
    %182 = vmatprep.subr.mxu0 0.0
    %183 = vmatpush1.msra.mxu0 0.0
    %184 = vmatprep.subr.mxu0 0.0
    %185 = vmatpush1.msra.mxu0 0.0
    %186 = vmatprep.subr.mxu0 0.0
    %187 = vmatpush1.msra.mxu0 0.0
    %188 = vmatprep.subr.mxu0 0.0
    %189 = vmatpush1.msra.mxu0 0.0
    %190 = vmatprep.subr.mxu0 0.0
    %191 = vmatpush1.msra.mxu0 0.0
    %192 = vmatprep.subr.mxu0 0.0
    %193 = vmatpush1.msra.mxu0 0.0
    %194 = vmatprep.subr.mxu0 0.0
    %195 = vmatpush1.msra.mxu0 0.0
    %196 = vmatprep.subr.mxu0 0.0
    %197 = vmatpush1.msra.mxu0 0.0
    %198 = vmatprep.subr.mxu0 0.0
    %199 = vmatpush1.msra.mxu0 0.0
    %200 = vmatprep.subr.mxu0 0.0
    %201 = vmatpush1.msra.mxu0 0.0
    %202 = vmatprep.subr.mxu0 0.0
    %203 = vmatpush1.msra.mxu0 0.0
    %204 = vmatprep.subr.mxu0 0.0
    %205 = vmatpush1.msra.mxu0 0.0
    %206 = vmatprep.subr.mxu0 0.0
    %207 = vmatpush1.msra.mxu0 0.0
    %208 = vmatprep.subr.mxu0 0.0
    %209 = vmatpush1.msra.mxu0 0.0
    %210 = vmatprep.subr.mxu0 0.0
    %211 = vmatpush1.msra.mxu0 0.0
    %212 = vmatprep.subr.mxu0 0.0
    %213 = vmatpush1.msra.mxu0 0.0
    %214 = vmatprep.subr.mxu0 0.0
    %215 = vmatpush1.msra.mxu0 0.0
    %216 = vmatprep.subr.mxu0 0.0
    %217 = vmatpush1.msra.mxu0 0.0
    %218 = vmatprep.subr.mxu0 0.0
    %219 = vmatpush1.msra.mxu0 0.0
    %220 = vmatprep.subr.mxu0 0.0
    %221 = vmatpush1.msra.mxu0 0.0
    %222 = vmatprep.subr.mxu0 0.0
    %223 = vmatpush1.msra.mxu0 0.0
    %224 = vmatprep.mubr.f32.mxu0 0.0
    %225 = vmatmul.mubr.f32.gmra.mrb[0].mxu0 %v158
    %v226 = vpop.f32.mrb[0].mxu0
    %v227 = vadd.f32 0.0, %v226
    %v228 = vpop.f32.mrb[0].mxu0
    %229 = vdwg.mxu0
    %vm230 = vcmask 130048
    %v232 = vsel %vm230, %v152, 0
    %234 = vmatprep.subr.mxu0 0.0
    %235 = vmatpush1.msra.mxu0 %v153
    %236 = vmatprep.subr.mxu0 0.0
    %237 = vmatpush1.msra.mxu0 %v154
    %238 = vmatprep.subr.mxu0 0.0
    %239 = vmatpush1.msra.mxu0 0.0
    %240 = vmatprep.subr.mxu0 0.0
    %241 = vmatpush1.msra.mxu0 0.0
    %242 = vmatprep.subr.mxu0 0.0
    %243 = vmatpush1.msra.mxu0 0.0
    %244 = vmatprep.subr.mxu0 0.0
    %245 = vmatpush1.msra.mxu0 0.0
    %246 = vmatprep.subr.mxu0 0.0
    %247 = vmatpush1.msra.mxu0 0.0
    %248 = vmatprep.subr.mxu0 0.0
    %249 = vmatpush1.msra.mxu0 0.0
    %250 = vmatprep.subr.mxu0 0.0
    %251 = vmatpush1.msra.mxu0 0.0
    %252 = vmatprep.subr.mxu0 0.0
    %253 = vmatpush1.msra.mxu0 0.0
    %254 = vmatprep.subr.mxu0 0.0
    %255 = vmatpush1.msra.mxu0 0.0
    %256 = vmatprep.subr.mxu0 0.0
    %257 = vmatpush1.msra.mxu0 0.0
    %258 = vmatprep.subr.mxu0 0.0
    %259 = vmatpush1.msra.mxu0 0.0
    %260 = vmatprep.subr.mxu0 0.0
    %261 = vmatpush1.msra.mxu0 0.0
    %262 = vmatprep.subr.mxu0 0.0
    %263 = vmatpush1.msra.mxu0 0.0
    %264 = vmatprep.subr.mxu0 0.0
    %265 = vmatpush1.msra.mxu0 0.0
    %266 = vmatprep.subr.mxu0 0.0
    %267 = vmatpush1.msra.mxu0 0.0
    %268 = vmatprep.subr.mxu0 0.0
    %269 = vmatpush1.msra.mxu0 0.0
    %270 = vmatprep.subr.mxu0 0.0
    %271 = vmatpush1.msra.mxu0 0.0
    %272 = vmatprep.subr.mxu0 0.0
    %273 = vmatpush1.msra.mxu0 0.0
    %274 = vmatprep.subr.mxu0 0.0
    %275 = vmatpush1.msra.mxu0 0.0
    %276 = vmatprep.subr.mxu0 0.0
    %277 = vmatpush1.msra.mxu0 0.0
    %278 = vmatprep.subr.mxu0 0.0
    %279 = vmatpush1.msra.mxu0 0.0
    %280 = vmatprep.subr.mxu0 0.0
    %281 = vmatpush1.msra.mxu0 0.0
    %282 = vmatprep.subr.mxu0 0.0
    %283 = vmatpush1.msra.mxu0 0.0
    %284 = vmatprep.subr.mxu0 0.0
    %285 = vmatpush1.msra.mxu0 0.0
    %286 = vmatprep.subr.mxu0 0.0
    %287 = vmatpush1.msra.mxu0 0.0
    %288 = vmatprep.subr.mxu0 0.0
    %289 = vmatpush1.msra.mxu0 0.0
    %290 = vmatprep.subr.mxu0 0.0
    %291 = vmatpush1.msra.mxu0 0.0
    %292 = vmatprep.subr.mxu0 0.0
    %293 = vmatpush1.msra.mxu0 0.0
    %294 = vmatprep.subr.mxu0 0.0
    %295 = vmatpush1.msra.mxu0 0.0
    %296 = vmatprep.subr.mxu0 0.0
    %297 = vmatpush1.msra.mxu0 0.0
    %298 = vmatprep.mubr.f32.mxu0 0.0
    %299 = vmatmul.mubr.f32.gmra.mrb[0].mxu0 %v232
    %v300 = vpop.f32.mrb[0].mxu0
    %v301 = vadd.f32 %v227, %v300
    %v302 = vpop.f32.mrb[0].mxu0
    %303 = vdwg.mxu0
    %v304 = vsel %vm112, %v301, 0.0
    %v305 = vrot.slane %v304, 4
    %v306 = vadd.f32 %v304, %v305
    %v307 = vrot.slane %v306, 2
    %v308 = vadd.f32 %v306, %v307
    %v309 = vrot.slane %v308, 1
    %v310 = vadd.f32 %v308, %v309
    %v311 = vmul.f32 %v310, %v120
    %v312 = vmul.f32 %v301, %v301
    %v313 = vsel %vm112, %v312, 0.0
    %v314 = vrot.slane %v313, 4
    %v315 = vadd.f32 %v313, %v314
    %v316 = vrot.slane %v315, 2
    %v317 = vadd.f32 %v315, %v316
    %v318 = vrot.slane %v317, 1
    %v319 = vadd.f32 %v317, %v318
    %v320 = vmul.f32 %v319, %v120
    %v321 = vmul.f32 %v311, %v311
    %v322 = vsub.f32 %v320, %v321
    %v323 = vmax.f32 %v322, 0.0
    %v324 = vadd.f32 %v323, 1e-05
    %v325 = vrsqrt.pop %v324
    %v326 = vmul.f32 %v33, %v325
    %v327 = vlaneseq
    %v328 = vshrl.u32 %v327, 7
    %v329 = vsub.s32 2, %v328
    %v330 = vrot.slane %v326, %v329
    %v331 = vmul.f32 %v301, %v330
    %v332 = vmul.f32 %v311, %v326
    %v334 = vrot.slane %v332, 7
    %v336 = vsub.f32 %v33, %v334
    %v337 = vlaneseq
    %v338 = vshrl.u32 %v337, 7
    %v339 = vsub.s32 3, %v338
    %v340 = vrot.slane %v336, %v339
    %v341 = vadd.f32 %v331, %v340
    %v342 = vmul.f32 %v341, 0.5
    %v343 = vmul.f32 %v342, 1.442695
    %v344 = vpow.pop %v343
    %346 = vrot.lane.b32.xlu0 %v344, 120
    %v347 = vpop.permute.xlu0 %346
    %v349 = vmul.f32 %v32, %v347
    %v350 = vadd.f32 %v349, %v341
    %v351 = vld [vmem:[%s5] sm:$0xff]
    %v353 = vsel %vm156, %v350, 0
    %355 = vmatprep.subr.mxu0 0.0
    %356 = vmatpush1.msra.mxu0 %v351
    %357 = vmatprep.subr.mxu0 0.0
    %358 = vmatpush1.msra.mxu0 0.0
    %359 = vmatprep.subr.mxu0 0.0
    %360 = vmatpush1.msra.mxu0 0.0
    %361 = vmatprep.subr.mxu0 0.0
    %362 = vmatpush1.msra.mxu0 0.0
    %363 = vmatprep.subr.mxu0 0.0
    %364 = vmatpush1.msra.mxu0 0.0
    %365 = vmatprep.subr.mxu0 0.0
    %366 = vmatpush1.msra.mxu0 0.0
    %367 = vmatprep.subr.mxu0 0.0
    %368 = vmatpush1.msra.mxu0 0.0
    %369 = vmatprep.subr.mxu0 0.0
    %370 = vmatpush1.msra.mxu0 0.0
    %371 = vmatprep.subr.mxu0 0.0
    %372 = vmatpush1.msra.mxu0 0.0
    %373 = vmatprep.subr.mxu0 0.0
    %374 = vmatpush1.msra.mxu0 0.0
    %375 = vmatprep.subr.mxu0 0.0
    %376 = vmatpush1.msra.mxu0 0.0
    %377 = vmatprep.subr.mxu0 0.0
    %378 = vmatpush1.msra.mxu0 0.0
    %379 = vmatprep.subr.mxu0 0.0
    %380 = vmatpush1.msra.mxu0 0.0
    %381 = vmatprep.subr.mxu0 0.0
    %382 = vmatpush1.msra.mxu0 0.0
    %383 = vmatprep.subr.mxu0 0.0
    %384 = vmatpush1.msra.mxu0 0.0
    %385 = vmatprep.subr.mxu0 0.0
    %386 = vmatpush1.msra.mxu0 0.0
    %387 = vmatprep.subr.mxu0 0.0
    %388 = vmatpush1.msra.mxu0 0.0
    %389 = vmatprep.subr.mxu0 0.0
    %390 = vmatpush1.msra.mxu0 0.0
    %391 = vmatprep.subr.mxu0 0.0
    %392 = vmatpush1.msra.mxu0 0.0
    %393 = vmatprep.subr.mxu0 0.0
    %394 = vmatpush1.msra.mxu0 0.0
    %395 = vmatprep.subr.mxu0 0.0
    %396 = vmatpush1.msra.mxu0 0.0
    %397 = vmatprep.subr.mxu0 0.0
    %398 = vmatpush1.msra.mxu0 0.0
    %399 = vmatprep.subr.mxu0 0.0
    %400 = vmatpush1.msra.mxu0 0.0
    %401 = vmatprep.subr.mxu0 0.0
    %402 = vmatpush1.msra.mxu0 0.0
    %403 = vmatprep.subr.mxu0 0.0
    %404 = vmatpush1.msra.mxu0 0.0
    %405 = vmatprep.subr.mxu0 0.0
    %406 = vmatpush1.msra.mxu0 0.0
    %407 = vmatprep.subr.mxu0 0.0
    %408 = vmatpush1.msra.mxu0 0.0
    %409 = vmatprep.subr.mxu0 0.0
    %410 = vmatpush1.msra.mxu0 0.0
    %411 = vmatprep.subr.mxu0 0.0
    %412 = vmatpush1.msra.mxu0 0.0
    %413 = vmatprep.subr.mxu0 0.0
    %414 = vmatpush1.msra.mxu0 0.0
    %415 = vmatprep.subr.mxu0 0.0
    %416 = vmatpush1.msra.mxu0 0.0
    %417 = vmatprep.subr.mxu0 0.0
    %418 = vmatpush1.msra.mxu0 0.0
    %419 = vmatprep.mubr.f32.mxu0 0.0
    %420 = vmatmul.mubr.f32.gmra.mrb[0].mxu0 %v353
    %v421 = vpop.f32.mrb[0].mxu0
    %v422 = vadd.f32 0.0, %v421
    %v423 = vpop.f32.mrb[0].mxu0
    %424 = vdwg.mxu0
    %v425 = vsel %vm112, %v422, 0.0
    %v426 = vrot.slane %v425, 4
    %v427 = vadd.f32 %v425, %v426
    %v428 = vrot.slane %v427, 2
    %v429 = vadd.f32 %v427, %v428
    %v430 = vrot.slane %v429, 1
    %v431 = vadd.f32 %v429, %v430
    %v432 = vmul.f32 %v431, %v120
    %v433 = vmul.f32 %v422, %v422
    %v434 = vsel %vm112, %v433, 0.0
    %v435 = vrot.slane %v434, 4
    %v436 = vadd.f32 %v434, %v435
    %v437 = vrot.slane %v436, 2
    %v438 = vadd.f32 %v436, %v437
    %v439 = vrot.slane %v438, 1
    %v440 = vadd.f32 %v438, %v439
    %v441 = vmul.f32 %v440, %v120
    %v442 = vmul.f32 %v432, %v432
    %v443 = vsub.f32 %v441, %v442
    %v444 = vmax.f32 %v443, 0.0
    %v445 = vadd.f32 %v444, 1e-05
    %v446 = vrsqrt.pop %v445
    %v447 = vmul.f32 %v33, %v446
    %v448 = vlaneseq
    %v449 = vshrl.u32 %v448, 7
    %v450 = vsub.s32 4, %v449
    %v451 = vrot.slane %v447, %v450
    %v452 = vmul.f32 %v422, %v451
    %v453 = vmul.f32 %v432, %v447
    %v455 = vrot.slane %v453, 7
    %v457 = vsub.f32 %v33, %v455
    %v458 = vlaneseq
    %v459 = vshrl.u32 %v458, 7
    %v460 = vsub.s32 5, %v459
    %v461 = vrot.slane %v457, %v460
    %v462 = vadd.f32 %v452, %v461
    %v463 = vmax.f32 %v462, 0.0
    %v464 = vld [vmem:[%s6] sm:$0xff]
    %v465 = vld [vmem:[%s6 + $0x8] sm:$0xff]
    %v467 = vsel %vm230, %v463, 0
    %469 = vmatprep.subr.mxu0 0.0
    %470 = vmatpush1.msra.mxu0 %v464
    %471 = vmatprep.subr.mxu0 0.0
    %472 = vmatpush1.msra.mxu0 %v465
    %473 = vmatprep.subr.mxu0 0.0
    %474 = vmatpush1.msra.mxu0 0.0
    %475 = vmatprep.subr.mxu0 0.0
    %476 = vmatpush1.msra.mxu0 0.0
    %477 = vmatprep.subr.mxu0 0.0
    %478 = vmatpush1.msra.mxu0 0.0
    %479 = vmatprep.subr.mxu0 0.0
    %480 = vmatpush1.msra.mxu0 0.0
    %481 = vmatprep.subr.mxu0 0.0
    %482 = vmatpush1.msra.mxu0 0.0
    %483 = vmatprep.subr.mxu0 0.0
    %484 = vmatpush1.msra.mxu0 0.0
    %485 = vmatprep.subr.mxu0 0.0
    %486 = vmatpush1.msra.mxu0 0.0
    %487 = vmatprep.subr.mxu0 0.0
    %488 = vmatpush1.msra.mxu0 0.0
    %489 = vmatprep.subr.mxu0 0.0
    %490 = vmatpush1.msra.mxu0 0.0
    %491 = vmatprep.subr.mxu0 0.0
    %492 = vmatpush1.msra.mxu0 0.0
    %493 = vmatprep.subr.mxu0 0.0
    %494 = vmatpush1.msra.mxu0 0.0
    %495 = vmatprep.subr.mxu0 0.0
    %496 = vmatpush1.msra.mxu0 0.0
    %497 = vmatprep.subr.mxu0 0.0
    %498 = vmatpush1.msra.mxu0 0.0
    %499 = vmatprep.subr.mxu0 0.0
    %500 = vmatpush1.msra.mxu0 0.0
    %501 = vmatprep.subr.mxu0 0.0
    %502 = vmatpush1.msra.mxu0 0.0
    %503 = vmatprep.subr.mxu0 0.0
    %504 = vmatpush1.msra.mxu0 0.0
    %505 = vmatprep.subr.mxu0 0.0
    %506 = vmatpush1.msra.mxu0 0.0
    %507 = vmatprep.subr.mxu0 0.0
    %508 = vmatpush1.msra.mxu0 0.0
    %509 = vmatprep.subr.mxu0 0.0
    %510 = vmatpush1.msra.mxu0 0.0
    %511 = vmatprep.subr.mxu0 0.0
    %512 = vmatpush1.msra.mxu0 0.0
    %513 = vmatprep.subr.mxu0 0.0
    %514 = vmatpush1.msra.mxu0 0.0
    %515 = vmatprep.subr.mxu0 0.0
    %516 = vmatpush1.msra.mxu0 0.0
    %517 = vmatprep.subr.mxu0 0.0
    %518 = vmatpush1.msra.mxu0 0.0
    %519 = vmatprep.subr.mxu0 0.0
    %520 = vmatpush1.msra.mxu0 0.0
    %521 = vmatprep.subr.mxu0 0.0
    %522 = vmatpush1.msra.mxu0 0.0
    %523 = vmatprep.subr.mxu0 0.0
    %524 = vmatpush1.msra.mxu0 0.0
    %525 = vmatprep.subr.mxu0 0.0
    %526 = vmatpush1.msra.mxu0 0.0
    %527 = vmatprep.subr.mxu0 0.0
    %528 = vmatpush1.msra.mxu0 0.0
    %529 = vmatprep.subr.mxu0 0.0
    %530 = vmatpush1.msra.mxu0 0.0
    %531 = vmatprep.subr.mxu0 0.0
    %532 = vmatpush1.msra.mxu0 0.0
    %533 = vmatprep.mubr.f32.mxu0 0.0
    %534 = vmatmul.mubr.f32.gmra.mrb[0].mxu0 %v467
    %v535 = vpop.f32.mrb[0].mxu0
    %v536 = vadd.f32 0.0, %v535
    %v537 = vpop.f32.mrb[0].mxu0
    %538 = vdwg.mxu0
    %vm539 = vcmask 257024
    %v540 = vsel %vm539, %v536, 0.0
    %v541 = vrot.slane %v540, 4
    %v542 = vadd.f32 %v540, %v541
    %v543 = vrot.slane %v542, 2
    %v544 = vadd.f32 %v542, %v543
    %v545 = vrot.slane %v544, 1
    %v546 = vadd.f32 %v544, %v545
    %v547 = vmul.f32 %v546, %v120
    %v548 = vmul.f32 %v536, %v536
    %v549 = vsel %vm539, %v548, 0.0
    %v550 = vrot.slane %v549, 4
    %v551 = vadd.f32 %v549, %v550
    %v552 = vrot.slane %v551, 2
    %v553 = vadd.f32 %v551, %v552
    %v554 = vrot.slane %v553, 1
    %v555 = vadd.f32 %v553, %v554
    %v556 = vmul.f32 %v555, %v120
    %v557 = vmul.f32 %v547, %v547
    %v558 = vsub.f32 %v556, %v557
    %v559 = vmax.f32 %v558, 0.0
    %v560 = vadd.f32 %v559, 1e-05
    %v561 = vrsqrt.pop %v560
    %v562 = vmul.f32 %v33, %v561
    %v563 = vlaneseq
    %v564 = vshrl.u32 %v563, 7
    %v565 = vsub.s32 6, %v564
    %v566 = vrot.slane %v562, %v565
    %v567 = vmul.f32 %v536, %v566
    %v568 = vmul.f32 %v547, %v562
    %v570 = vrot.slane %v568, 7
    %v572 = vsub.f32 %v33, %v570
    %v573 = vlaneseq
    %v574 = vshrl.u32 %v573, 7
    %v575 = vsub.s32 7, %v574
    %v576 = vrot.slane %v572, %v575
    %v577 = vadd.f32 %v567, %v576
    %v578 = vxor.u32 %v577, 2147483648
    %v579 = vmul.f32 %v578, 1.442695
    %v580 = vpow.pop %v579
    %v581 = vadd.f32 %v580, 1.0
    %v582 = vrcp.pop %v581
    %v583 = vmul.f32 1.0, %v582
    %584 = vrot.lane.b32.xlu0 %v350, 16
    %v585 = vpop.permute.xlu0 %584
    %588 = vrot.lane.b32.xlu0 %v583, 24
    %v589 = vpop.permute.xlu0 %588
    %v591 = vsel %vm230, %v341, %v585
    %vm592 = vcmask 195584
    %v593 = vsel %vm592, %v591, %v589
    %vm594 = vcmask 457728
    %v595 = vsel %vm594, %v593, 0.0
    %596 = vst [vmem:[#allocation2] sm:$0xf] %v595
    // Predicated region
    $region34: #{tpu_custom_call.1} parent=1 // pred_check
      _
    $region35: #{tpu_custom_call.1} parent=1 // pred_check_branch
      %598 = sbr.rel (0) target = $region37
    $region36: #{tpu_custom_call.1} parent=1 // pred_region
      %s600 = ssub.s32 64, 64
      %601 = vsyncadd [#allocation3], %s600
      %s603 = sshll.u32 [#allocation2], 4
      %s604 = int_to_ptr.vmem [resolvable:$true] %s603
      %606 = dma.vmem_to_hbm [thread:$0]  %s604, 64, %s8, [#allocation3]
    $region37: #{tpu_custom_call.1} parent=1 // pred_fallthru
      _
    // Predicated region
    $region38: #{tpu_custom_call.1} parent=1 // pred_check
      _
    $region39: #{tpu_custom_call.1} parent=1 // pred_check_branch
      %608 = sbr.rel (0) target = $region41
    $region40: #{tpu_custom_call.1} parent=1 // pred_region
      %609 = dma.done [#allocation3], 64
    $region41: #{tpu_custom_call.1} parent=1 // pred_fallthru
      _
    %610 = vsyncpa [#allocation3], 1

</llo_original>
